<compile_context>
chip_gen: v6e
topology: v6e:2x2x1
jax: 0.10.0
libtpu: 0.0.40
codegen_flags: <defaults>
</compile_context>

<pallas_src>
import functools

import jax
import jax.numpy as jnp
from jax.experimental import pallas as pl
from jax.experimental.pallas import tpu as pltpu


def _class_capsule_kernel(x_ref, w_ref, o_ref):
    # x_ref: (B, K)   bf16, K = C*Dc = 128        (lane-dense feature slab)
    # w_ref: (K, CN)  bf16, CN = C*P*Dp = 640     (block-diagonal weights)
    # o_ref: (B, CN)  f32                          (lane-dense, 128-multiple N)
    o_ref[...] = jnp.dot(
        x_ref[...], w_ref[...], preferred_element_type=jnp.float32
    )


def prepare_class_capsule_weight(W, compute_dtype=jnp.bfloat16):
    """One-time (module-init) relayout of W (P, C, Dc, Dp) into a block-diagonal
    (C*Dc, C*P*Dp) matrix so the forward pass is a single lane-dense matmul.

    Hoisting this out of the forward removes the per-call XLA relayout of the
    parameter (which at these sizes costs as much as the kernel itself)."""
    P, C, Dc, Dp = W.shape
    N = P * Dp
    w_cdn = jnp.transpose(W, (1, 2, 0, 3)).reshape(C, Dc, N)      # (C, Dc, N)
    eye = jnp.eye(C, dtype=W.dtype)
    # w_bd[c, dc, e, n] = w_cdn[c, dc, n] * (c == e)
    w_bd = jnp.einsum("cdn,ce->cden", w_cdn, eye)                 # (C, Dc, C, N)
    return w_bd.reshape(C * Dc, C * N).astype(compute_dtype)      # (K, C*N)


@functools.partial(
    jax.jit, static_argnames=("parent_num", "parent_dim", "compute_dtype")
)
def class_capsule_forward(
    feature, w_bd, *, parent_num, parent_dim, compute_dtype=jnp.bfloat16
):
    """feature: (B, C, Dc), w_bd: precomputed (C*Dc, C*P*Dp).
    Returns the PyTorch layout (P, B, C, 1, Dp), f32."""
    B, C, Dc = feature.shape
    K, CN = w_bd.shape
    assert K == C * Dc
    assert CN == C * parent_num * parent_dim

    # Per-call layout plumbing on the activation only: flatten to (B, 128).
    x_flat = feature.reshape(B, K).astype(compute_dtype)

    out_flat = pl.pallas_call(
        _class_capsule_kernel,
        out_shape=jax.ShapeDtypeStruct((B, CN), jnp.float32),
        in_specs=[
            pl.BlockSpec(memory_space=pltpu.MemorySpace.VMEM),
            pl.BlockSpec(memory_space=pltpu.MemorySpace.VMEM),
        ],
        out_specs=pl.BlockSpec(memory_space=pltpu.MemorySpace.VMEM),
    )(x_flat, w_bd)

    # out_flat[b, c*P*Dp + p*Dp + dp] == sum_dc feature[b,c,dc] * W[p,c,dc,dp]
    # Restore the exact PyTorch output layout (P, B, C, 1, Dp) at the very end.
    out = out_flat.reshape(B, C, parent_num, parent_dim)   # (B, C, P, Dp)
    out = jnp.transpose(out, (2, 0, 1, 3))                 # (P, B, C, Dp)
    return out[:, :, :, None, :]                           # (P, B, C, 1, Dp)


if __name__ == "__main__":
    # Small shapes consistent with the module's __init__/forward defaults.
    batch = 2
    child_capsule_num = 8
    child_capsule_dim = 16
    parent_capsule_num = 10
    parent_capsule_dim = 8

    key = jax.random.PRNGKey(0)
    k_x, k_w = jax.random.split(key)

    feature = jax.random.normal(
        k_x, (batch, child_capsule_num, child_capsule_dim), dtype=jnp.float32
    )
    W = jax.random.normal(
        k_w,
        (parent_capsule_num, child_capsule_num, child_capsule_dim, parent_capsule_dim),
        dtype=jnp.float32,
    )

    # Module-init: precompute the block-diagonal bf16 weight once.
    w_bd = jax.block_until_ready(prepare_class_capsule_weight(W, jnp.bfloat16))

    out = class_capsule_forward(
        feature,
        w_bd,
        parent_num=parent_capsule_num,
        parent_dim=parent_capsule_dim,
        compute_dtype=jnp.bfloat16,
    )
    out = jax.block_until_ready(out)

    # Sanity check: reference uses the same bf16-rounded inputs with f32
    # accumulation at highest precision, so the comparison is deterministic
    # (the kernel's bf16xbf16->f32 MXU path matches up to f32 sum-order ULPs).
    x_q = feature.astype(jnp.bfloat16).astype(jnp.float32)
    w_q = W.astype(jnp.bfloat16).astype(jnp.float32)
    ref = jnp.einsum(
        "bcd,pcde->pbce", x_q, w_q, precision=jax.lax.Precision.HIGHEST
    )[:, :, :, None, :]

    assert out.shape == (
        parent_capsule_num,
        batch,
        child_capsule_num,
        1,
        parent_capsule_dim,
    ), out.shape
    assert jnp.allclose(out, ref, atol=1e-4, rtol=1e-4)

    print("KERNEL_OK")
</pallas_src>

<mosaic_0001>
module attributes {stable_mosaic.version = 11 : i64} {
  func.func @_class_capsule_kernel(%arg0: memref<2x128xbf16, #tpu.memory_space<vmem>>, %arg1: memref<128x640xbf16, #tpu.memory_space<vmem>>, %arg2: memref<2x640xf32, #tpu.memory_space<vmem>>) attributes {dimension_semantics = [], scalar_prefetch = 0 : i64, scratch_operands = 0 : i64, tpu.core_type = #tpu.core_type<tc>} {
    %c0 = arith.constant 0 : index
    %c0_0 = arith.constant 0 : index
    %0 = vector.load %arg0[%c0, %c0_0] : memref<2x128xbf16, #tpu.memory_space<vmem>>, vector<2x128xbf16>
    %c0_1 = arith.constant 0 : index
    %c0_2 = arith.constant 0 : index
    %1 = vector.load %arg1[%c0_1, %c0_2] : memref<128x640xbf16, #tpu.memory_space<vmem>>, vector<128x640xbf16>
    %cst = arith.constant dense<0.000000e+00> : vector<2x640xf32>
    %2 = tpu.matmul %0, %1, %cst {dimension_numbers = #tpu.dot_dimension_numbers<[1], [0], [0], [1], [0, 0, 1, 1], [], []>} : vector<2x128xbf16>, vector<128x640xbf16>, vector<2x640xf32> -> vector<2x640xf32>
    %c0_3 = arith.constant 0 : index
    %c0_4 = arith.constant 0 : index
    %3 = vector.load %arg2[%c0_3, %c0_4] : memref<2x640xf32, #tpu.memory_space<vmem>>, vector<2x640xf32>
    tpu.vector_store %arg2[%c0_3, %c0_4], %2 {strides = array<i32>} : memref<2x640xf32, #tpu.memory_space<vmem>>, vector<2x640xf32>,
    return
  }
}

</mosaic_0001>

<llo_original>
// kernel: class_capsule_forward.1
$region0: #{class_capsule_forward.1}
  #allocation0 [shape = 'u32[]', space=smem, size = 0x4, offset = 0x4, fixed_abs, tag = 'smem constant byte address 0x4 - core index']
  #allocation1 [shape = 'u32[144,128]{1,0:T(1,128)}', space=vmem, size = 0x12000, scoped, tag = 'internal scratch']
  %s0 = inlined_call_operand.vmem [shape: bf16[2,128], index: 0, kind: input, shape index: {}]
  %s1 = inlined_call_operand.hbm [shape: bf16[128,640], index: 1, kind: input, shape index: {}]
  %s2 = inlined_call_operand.vmem [shape: f32[2,640], index: 2, kind: output, shape index: {}]
  %s3 = sld [smem:[#allocation0]]
  $region22: #{class_capsule_forward.1} parent=0
    _
  %s5 = ssub.s32 1, %s3
  %s6 = scalar_select 0, %s5, %s3
  $region1: #{class_capsule_forward.1} parent=0
    #allocation2 [shape = 'u8[163840]{0}', space=vmem, size = 0x28000, scoped, tag = 'input window, operand 1, single buffered']
    #allocation3 [shape = 's32[1]{0}', space=sflag, size = 0x4, scoped, tag = 'scoped memory for class_capsule_forward.1']
    %7 = vsyncpa [#allocation3], 0
    // Predicated region
    $region2: #{class_capsule_forward.1} parent=1 // pred_check
      _
    $region3: #{class_capsule_forward.1} parent=1 // pred_check_branch
      %9 = sbr.rel (0) target = $region5
    $region4: #{class_capsule_forward.1} parent=1 // pred_region
      _
    $region5: #{class_capsule_forward.1} parent=1 // pred_fallthru
      _
    // Predicated region
    $region6: #{class_capsule_forward.1} parent=1 // pred_check
      _
    $region7: #{class_capsule_forward.1} parent=1 // pred_check_branch
      %11 = sbr.rel (0) target = $region9
    $region8: #{class_capsule_forward.1} parent=1 // pred_region
      %s13 = ssub.s32 5120, 5120
      %14 = vsyncadd [#allocation3], %s13
      %s15 = sshll.u32 [#allocation2], 4
      %s16 = int_to_ptr.vmem [resolvable:$true] %s15
      %21 = dma.hbm_to_vmem [thread:$0]  %s1, 5120, %s16, [#allocation3], 320, 320, 20
    $region9: #{class_capsule_forward.1} parent=1 // pred_fallthru
      _
    // Predicated region
    $region10: #{class_capsule_forward.1} parent=1 // pred_check
      _
    $region11: #{class_capsule_forward.1} parent=1 // pred_check_branch
      %23 = sbr.rel (0) target = $region13
    $region12: #{class_capsule_forward.1} parent=1 // pred_region
      %24 = dma.done [#allocation3], 5120
    $region13: #{class_capsule_forward.1} parent=1 // pred_fallthru
      _
    %v26 = vld [vmem:[%s0] sm:$0x1]
    %v27 = vld [vmem:[#allocation2] sm:$0xff]
    %v28 = vld [vmem:[#allocation2 + $0x8] sm:$0xff]
    %v29 = vld [vmem:[#allocation2 + $0x10] sm:$0xf]
    %v30 = vld [vmem:[#allocation2 + $0x14] sm:$0xff]
    %v31 = vld [vmem:[#allocation2 + $0x1c] sm:$0xff]
    %v32 = vld [vmem:[#allocation2 + $0x24] sm:$0xf]
    %v33 = vld [vmem:[#allocation2 + $0x28] sm:$0xff]
    %v34 = vld [vmem:[#allocation2 + $0x30] sm:$0xff]
    %v35 = vld [vmem:[#allocation2 + $0x38] sm:$0xf]
    %v36 = vld [vmem:[#allocation2 + $0x3c] sm:$0xff]
    %v37 = vld [vmem:[#allocation2 + $0x44] sm:$0xff]
    %v38 = vld [vmem:[#allocation2 + $0x4c] sm:$0xf]
    %v39 = vld [vmem:[#allocation2 + $0x50] sm:$0xff]
    %v40 = vld [vmem:[#allocation2 + $0x58] sm:$0xff]
    %v41 = vld [vmem:[#allocation2 + $0x60] sm:$0xf]
    %v42 = vld [vmem:[#allocation2 + $0x64] sm:$0xff]
    %v43 = vld [vmem:[#allocation2 + $0x6c] sm:$0xff]
    %v44 = vld [vmem:[#allocation2 + $0x74] sm:$0xf]
    %v45 = vld [vmem:[#allocation2 + $0x78] sm:$0xff]
    %v46 = vld [vmem:[#allocation2 + $0x80] sm:$0xff]
    %v47 = vld [vmem:[#allocation2 + $0x88] sm:$0xf]
    %v48 = vld [vmem:[#allocation2 + $0x8c] sm:$0xff]
    %v49 = vld [vmem:[#allocation2 + $0x94] sm:$0xff]
    %v50 = vld [vmem:[#allocation2 + $0x9c] sm:$0xf]
    %v51 = vld [vmem:[#allocation2 + $0xa0] sm:$0xff]
    %v52 = vld [vmem:[#allocation2 + $0xa8] sm:$0xff]
    %v53 = vld [vmem:[#allocation2 + $0xb0] sm:$0xf]
    %v54 = vld [vmem:[#allocation2 + $0xb4] sm:$0xff]
    %v55 = vld [vmem:[#allocation2 + $0xbc] sm:$0xff]
    %v56 = vld [vmem:[#allocation2 + $0xc4] sm:$0xf]
    %v57 = vld [vmem:[#allocation2 + $0xc8] sm:$0xff]
    %v58 = vld [vmem:[#allocation2 + $0xd0] sm:$0xff]
    %v59 = vld [vmem:[#allocation2 + $0xd8] sm:$0xf]
    %v60 = vld [vmem:[#allocation2 + $0xdc] sm:$0xff]
    %v61 = vld [vmem:[#allocation2 + $0xe4] sm:$0xff]
    %v62 = vld [vmem:[#allocation2 + $0xec] sm:$0xf]
    %v63 = vld [vmem:[#allocation2 + $0xf0] sm:$0xff]
    %v64 = vld [vmem:[#allocation2 + $0xf8] sm:$0xff]
    %v65 = vld [vmem:[#allocation2 + $0x100] sm:$0xf]
    %v66 = vld [vmem:[#allocation2 + $0x104] sm:$0xff]
    %v67 = vld [vmem:[#allocation2 + $0x10c] sm:$0xff]
    %v68 = vld [vmem:[#allocation2 + $0x114] sm:$0xf]
    %v69 = vld [vmem:[#allocation2 + $0x118] sm:$0xff]
    %v70 = vld [vmem:[#allocation2 + $0x120] sm:$0xff]
    %v71 = vld [vmem:[#allocation2 + $0x128] sm:$0xf]
    %v72 = vld [vmem:[#allocation2 + $0x12c] sm:$0xff]
    %v73 = vld [vmem:[#allocation2 + $0x134] sm:$0xff]
    %v74 = vld [vmem:[#allocation2 + $0x13c] sm:$0xf]
    %v123 = vunpack.c.l.b16 %v27
    %v124 = vunpack.c.h.b16 %v27
    %v125 = vunpack.c.l.b16 %v28
    %v126 = vunpack.c.h.b16 %v28
    %v127 = vunpack.c.l.b16 %v29
    %v128 = vunpack.c.l.b16 %v30
    %v129 = vunpack.c.h.b16 %v30
    %v130 = vunpack.c.l.b16 %v31
    %v131 = vunpack.c.h.b16 %v31
    %v132 = vunpack.c.l.b16 %v32
    %v133 = vunpack.c.l.b16 %v33
    %v134 = vunpack.c.h.b16 %v33
    %v135 = vunpack.c.l.b16 %v34
    %v136 = vunpack.c.h.b16 %v34
    %v137 = vunpack.c.l.b16 %v35
    %v138 = vunpack.c.l.b16 %v36
    %v139 = vunpack.c.h.b16 %v36
    %v140 = vunpack.c.l.b16 %v37
    %v141 = vunpack.c.h.b16 %v37
    %v142 = vunpack.c.l.b16 %v38
    %v143 = vunpack.c.l.b16 %v39
    %v144 = vunpack.c.h.b16 %v39
    %v145 = vunpack.c.l.b16 %v40
    %v146 = vunpack.c.h.b16 %v40
    %v147 = vunpack.c.l.b16 %v41
    %v148 = vunpack.c.l.b16 %v42
    %v149 = vunpack.c.h.b16 %v42
    %v150 = vunpack.c.l.b16 %v43
    %v151 = vunpack.c.h.b16 %v43
    %v152 = vunpack.c.l.b16 %v44
    %v153 = vunpack.c.l.b16 %v45
    %v154 = vunpack.c.h.b16 %v45
    %v155 = vunpack.c.l.b16 %v46
    %v156 = vunpack.c.h.b16 %v46
    %v157 = vunpack.c.l.b16 %v47
    %v158 = vunpack.c.l.b16 %v48
    %v159 = vunpack.c.h.b16 %v48
    %v160 = vunpack.c.l.b16 %v49
    %v161 = vunpack.c.h.b16 %v49
    %v162 = vunpack.c.l.b16 %v50
    %v163 = vunpack.c.l.b16 %v51
    %v164 = vunpack.c.h.b16 %v51
    %v165 = vunpack.c.l.b16 %v52
    %v166 = vunpack.c.h.b16 %v52
    %v167 = vunpack.c.l.b16 %v53
    %v168 = vunpack.c.l.b16 %v54
    %v169 = vunpack.c.h.b16 %v54
    %v170 = vunpack.c.l.b16 %v55
    %v171 = vunpack.c.h.b16 %v55
    %v172 = vunpack.c.l.b16 %v56
    %v173 = vunpack.c.l.b16 %v57
    %v174 = vunpack.c.h.b16 %v57
    %v175 = vunpack.c.l.b16 %v58
    %v176 = vunpack.c.h.b16 %v58
    %v177 = vunpack.c.l.b16 %v59
    %v178 = vunpack.c.l.b16 %v60
    %v179 = vunpack.c.h.b16 %v60
    %v180 = vunpack.c.l.b16 %v61
    %v181 = vunpack.c.h.b16 %v61
    %v182 = vunpack.c.l.b16 %v62
    %v183 = vunpack.c.l.b16 %v63
    %v184 = vunpack.c.h.b16 %v63
    %v185 = vunpack.c.l.b16 %v64
    %v186 = vunpack.c.h.b16 %v64
    %v187 = vunpack.c.l.b16 %v65
    %v188 = vunpack.c.l.b16 %v66
    %v189 = vunpack.c.h.b16 %v66
    %v190 = vunpack.c.l.b16 %v67
    %v191 = vunpack.c.h.b16 %v67
    %v192 = vunpack.c.l.b16 %v68
    %v193 = vunpack.c.l.b16 %v69
    %v194 = vunpack.c.h.b16 %v69
    %v195 = vunpack.c.l.b16 %v70
    %v196 = vunpack.c.h.b16 %v70
    %v197 = vunpack.c.l.b16 %v71
    %v198 = vunpack.c.l.b16 %v72
    %v199 = vunpack.c.h.b16 %v72
    %v200 = vunpack.c.l.b16 %v73
    %v201 = vunpack.c.h.b16 %v73
    %v202 = vunpack.c.l.b16 %v74
    %v203 = vpack.c.b16 %v128, %v123
    %v204 = vpack.c.b16 %v129, %v124
    %v205 = vpack.c.b16 %v130, %v125
    %v206 = vpack.c.b16 %v131, %v126
    %v207 = vpack.c.b16 %v132, %v127
    %v208 = vpack.c.b16 %v138, %v133
    %v209 = vpack.c.b16 %v139, %v134
    %v210 = vpack.c.b16 %v140, %v135
    %v211 = vpack.c.b16 %v141, %v136
    %v212 = vpack.c.b16 %v142, %v137
    %v213 = vpack.c.b16 %v148, %v143
    %v214 = vpack.c.b16 %v149, %v144
    %v215 = vpack.c.b16 %v150, %v145
    %v216 = vpack.c.b16 %v151, %v146
    %v217 = vpack.c.b16 %v152, %v147
    %v218 = vpack.c.b16 %v158, %v153
    %v219 = vpack.c.b16 %v159, %v154
    %v220 = vpack.c.b16 %v160, %v155
    %v221 = vpack.c.b16 %v161, %v156
    %v222 = vpack.c.b16 %v162, %v157
    %v223 = vpack.c.b16 %v168, %v163
    %v224 = vpack.c.b16 %v169, %v164
    %v225 = vpack.c.b16 %v170, %v165
    %v226 = vpack.c.b16 %v171, %v166
    %v227 = vpack.c.b16 %v172, %v167
    %v228 = vpack.c.b16 %v178, %v173
    %v229 = vpack.c.b16 %v179, %v174
    %v230 = vpack.c.b16 %v180, %v175
    %v231 = vpack.c.b16 %v181, %v176
    %v232 = vpack.c.b16 %v182, %v177
    %v233 = vpack.c.b16 %v188, %v183
    %v234 = vpack.c.b16 %v189, %v184
    %v235 = vpack.c.b16 %v190, %v185
    %v236 = vpack.c.b16 %v191, %v186
    %v237 = vpack.c.b16 %v192, %v187
    %v238 = vpack.c.b16 %v198, %v193
    %v239 = vpack.c.b16 %v199, %v194
    %v240 = vpack.c.b16 %v200, %v195
    %v241 = vpack.c.b16 %v201, %v196
    %v242 = vpack.c.b16 %v202, %v197
    %283 = vmatprep.subr.bf16.mxu0 %v239
    %284 = vmatpush1.bf16.msra.mxu0 %v238
    %285 = vmatprep.subr.bf16.mxu0 %v234
    %286 = vmatpush1.bf16.msra.mxu0 %v233
    %287 = vmatprep.subr.bf16.mxu0 %v229
    %288 = vmatpush1.bf16.msra.mxu0 %v228
    %289 = vmatprep.subr.bf16.mxu0 %v224
    %290 = vmatpush1.bf16.msra.mxu0 %v223
    %291 = vmatprep.subr.bf16.mxu0 %v219
    %292 = vmatpush1.bf16.msra.mxu0 %v218
    %293 = vmatprep.subr.bf16.mxu0 %v214
    %294 = vmatpush1.bf16.msra.mxu0 %v213
    %295 = vmatprep.subr.bf16.mxu0 %v209
    %296 = vmatpush1.bf16.msra.mxu0 %v208
    %297 = vmatprep.subr.bf16.mxu0 %v204
    %298 = vmatpush1.bf16.msra.mxu0 %v203
    %299 = vmatprep.subr.bf16.mxu0 0
    %300 = vmatpush2.bf16.msra.mxu0 0
    %301 = vmatprep.subr.bf16.mxu0 0
    %302 = vmatpush2.bf16.msra.mxu0 0
    %303 = vmatprep.subr.bf16.mxu0 0
    %304 = vmatpush2.bf16.msra.mxu0 0
    %305 = vmatprep.subr.bf16.mxu0 0
    %306 = vmatpush2.bf16.msra.mxu0 0
    %307 = vmatprep.subr.bf16.mxu0 0
    %308 = vmatpush2.bf16.msra.mxu0 0
    %309 = vmatprep.subr.bf16.mxu0 0
    %310 = vmatpush2.bf16.msra.mxu0 0
    %311 = vmatprep.subr.bf16.mxu0 0
    %312 = vmatpush2.bf16.msra.mxu0 0
    %313 = vmatprep.subr.bf16.mxu0 0
    %314 = vmatpush2.bf16.msra.mxu0 0
    %315 = vmatprep.mubr.bf16.mxu0 0
    %316 = vmatmul.mubr.bf16.gmra.mxu0 %v26
    %v317 = vpop.f32.mrf.mxu0
    %v318 = vadd.f32 0.0, %v317
    %v319 = vpop.f32.mrf.mxu0
    %v320 = vadd.f32 0.0, %v319
    %v321 = vpop.f32.mrf.mxu0
    %v322 = vpop.f32.mrf.mxu0
    %323 = vdwg.mxu0
    %324 = vmatprep.subr.bf16.mxu0 %v241
    %325 = vmatpush1.bf16.msra.mxu0 %v240
    %326 = vmatprep.subr.bf16.mxu0 %v236
    %327 = vmatpush1.bf16.msra.mxu0 %v235
    %328 = vmatprep.subr.bf16.mxu0 %v231
    %329 = vmatpush1.bf16.msra.mxu0 %v230
    %330 = vmatprep.subr.bf16.mxu0 %v226
    %331 = vmatpush1.bf16.msra.mxu0 %v225
    %332 = vmatprep.subr.bf16.mxu0 %v221
    %333 = vmatpush1.bf16.msra.mxu0 %v220
    %334 = vmatprep.subr.bf16.mxu0 %v216
    %335 = vmatpush1.bf16.msra.mxu0 %v215
    %336 = vmatprep.subr.bf16.mxu0 %v211
    %337 = vmatpush1.bf16.msra.mxu0 %v210
    %338 = vmatprep.subr.bf16.mxu0 %v206
    %339 = vmatpush1.bf16.msra.mxu0 %v205
    %340 = vmatprep.subr.bf16.mxu0 0
    %341 = vmatpush2.bf16.msra.mxu0 0
    %342 = vmatprep.subr.bf16.mxu0 0
    %343 = vmatpush2.bf16.msra.mxu0 0
    %344 = vmatprep.subr.bf16.mxu0 0
    %345 = vmatpush2.bf16.msra.mxu0 0
    %346 = vmatprep.subr.bf16.mxu0 0
    %347 = vmatpush2.bf16.msra.mxu0 0
    %348 = vmatprep.subr.bf16.mxu0 0
    %349 = vmatpush2.bf16.msra.mxu0 0
    %350 = vmatprep.subr.bf16.mxu0 0
    %351 = vmatpush2.bf16.msra.mxu0 0
    %352 = vmatprep.subr.bf16.mxu0 0
    %353 = vmatpush2.bf16.msra.mxu0 0
    %354 = vmatprep.subr.bf16.mxu0 0
    %355 = vmatpush2.bf16.msra.mxu0 0
    %356 = vmatprep.mubr.bf16.mxu0 0
    %357 = vmatmul.mubr.bf16.gmra.mxu0 %v26
    %v358 = vpop.f32.mrf.mxu0
    %v359 = vadd.f32 0.0, %v358
    %v360 = vpop.f32.mrf.mxu0
    %v361 = vadd.f32 0.0, %v360
    %v362 = vpop.f32.mrf.mxu0
    %v363 = vpop.f32.mrf.mxu0
    %364 = vdwg.mxu0
    %365 = vmatprep.subr.bf16.mxu0 0
    %366 = vmatpush1.bf16.msra.mxu0 %v242
    %367 = vmatprep.subr.bf16.mxu0 0
    %368 = vmatpush1.bf16.msra.mxu0 %v237
    %369 = vmatprep.subr.bf16.mxu0 0
    %370 = vmatpush1.bf16.msra.mxu0 %v232
    %371 = vmatprep.subr.bf16.mxu0 0
    %372 = vmatpush1.bf16.msra.mxu0 %v227
    %373 = vmatprep.subr.bf16.mxu0 0
    %374 = vmatpush1.bf16.msra.mxu0 %v222
    %375 = vmatprep.subr.bf16.mxu0 0
    %376 = vmatpush1.bf16.msra.mxu0 %v217
    %377 = vmatprep.subr.bf16.mxu0 0
    %378 = vmatpush1.bf16.msra.mxu0 %v212
    %379 = vmatprep.subr.bf16.mxu0 0
    %380 = vmatpush1.bf16.msra.mxu0 %v207
    %381 = vmatprep.subr.bf16.mxu0 0
    %382 = vmatpush2.bf16.msra.mxu0 0
    %383 = vmatprep.subr.bf16.mxu0 0
    %384 = vmatpush2.bf16.msra.mxu0 0
    %385 = vmatprep.subr.bf16.mxu0 0
    %386 = vmatpush2.bf16.msra.mxu0 0
    %387 = vmatprep.subr.bf16.mxu0 0
    %388 = vmatpush2.bf16.msra.mxu0 0
    %389 = vmatprep.subr.bf16.mxu0 0
    %390 = vmatpush2.bf16.msra.mxu0 0
    %391 = vmatprep.subr.bf16.mxu0 0
    %392 = vmatpush2.bf16.msra.mxu0 0
    %393 = vmatprep.subr.bf16.mxu0 0
    %394 = vmatpush2.bf16.msra.mxu0 0
    %395 = vmatprep.subr.bf16.mxu0 0
    %396 = vmatpush2.bf16.msra.mxu0 0
    %397 = vmatprep.mubr.bf16.mxu0 0
    %398 = vmatmul.mubr.bf16.gmra.mxu0 %v26
    %v399 = vpop.f32.mrf.mxu0
    %v400 = vadd.f32 0.0, %v399
    %v401 = vpop.f32.mrf.mxu0
    %v402 = vpop.f32.mrf.mxu0
    %v403 = vpop.f32.mrf.mxu0
    %404 = vdwg.mxu0
    %v410 = vcombine.low %v318, %v320
    %v411 = vcombine.low %v359, %v361
    %v413 = vunpack.c.l.s4 1983009808
    %v414 = vunpack.c.0.s8 %v413
    %v415 = vlaneseq
    %v416 = vshrl.u32 %v415, 7
    %v417 = vsub.s32 %v414, %v416
    %v418 = vrot.slane %v410, %v417
    %v420 = vunpack.c.l.s4 1983009808
    %v421 = vunpack.c.0.s8 %v420
    %v422 = vlaneseq
    %v423 = vshrl.u32 %v422, 7
    %v424 = vsub.s32 %v421, %v423
    %v425 = vrot.slane %v411, %v424
    %v426 = vcombine.low %v418, %v425
    %v428 = vunpack.c.l.s4 1983009808
    %v429 = vunpack.c.0.s8 %v428
    %v430 = vlaneseq
    %v431 = vshrl.u32 %v430, 7
    %v432 = vsub.s32 %v429, %v431
    %v433 = vrot.slane %v400, %v432
    %436 = vst [vmem:[%s2] sm:$0xff] %v426
    %437 = vst [vmem:[%s2 + $0x8] sm:$0x3] %v433
    // Predicated region
    $region14: #{class_capsule_forward.1} parent=1 // pred_check
      _
    $region15: #{class_capsule_forward.1} parent=1 // pred_check_branch
      %439 = sbr.rel (0) target = $region17
    $region16: #{class_capsule_forward.1} parent=1 // pred_region
      _
    $region17: #{class_capsule_forward.1} parent=1 // pred_fallthru
      _
    // Predicated region
    $region18: #{class_capsule_forward.1} parent=1 // pred_check
      _
    $region19: #{class_capsule_forward.1} parent=1 // pred_check_branch
      %441 = sbr.rel (0) target = $region21
    $region20: #{class_capsule_forward.1} parent=1 // pred_region
      _
    $region21: #{class_capsule_forward.1} parent=1 // pred_fallthru
      _
    %442 = vsyncpa [#allocation3], 1

</llo_original>
